<compile_context>
chip_gen: v7x
topology: tpu7x:2x2x1
jax: 0.10.0
libtpu: 0.0.40
codegen_flags: <defaults>
</compile_context>

<pallas_src>
import jax
import jax.numpy as jnp
import numpy as np
from jax.experimental import pallas as pl
from jax.experimental.pallas import tpu as pltpu


def _transposex2_kernel(x_ref, w_ref, scale_ref, shift_ref, o_ref, slab_ref):
    # x_ref:     (NB, H+2, W+2, Cin)   bf16 padded input tile (NB whole images)
    # w_ref:     (9*Cin, CO4)          bf16 fused per-tap weight, 4 phases in the lane dim
    # scale_ref: (1, CO4)              f32 folded BN scale (tiled over the 4 phases)
    # shift_ref: (1, CO4)              f32 folded conv-bias + BN shift
    # o_ref:     (NB*H*W, CO4)         rows = (n, h, w), lanes = (py, px, cout)
    # slab_ref:  (NB*H*W, 9*Cin)       bf16 im2col scratch (written + read once per tile)
    nb, hp, wp, cin = x_ref.shape
    H, W = hp - 2, wp - 2
    m = o_ref.shape[0]

    # Gather the 9 (dy, dx) taps directly from the ref (no full-tile load) into the slab.
    for dy in range(3):
        for dx in range(3):
            t = dy * 3 + dx
            tap = x_ref[:, dy:dy + H, dx:dx + W, :].reshape(m, cin)
            slab_ref[:, t * cin:(t + 1) * cin] = tap

    # Single MXU matmul with K = 9*Cin and f32 accumulation (replaces 9 dots + VPU adds).
    y = jnp.dot(slab_ref[...], w_ref[...], preferred_element_type=jnp.float32)
    y = y * scale_ref[...] + shift_ref[...]            # folded bias + BatchNorm (eval)
    o_ref[...] = jnp.maximum(y, 0.0).astype(o_ref.dtype)


def _round_up(v, m):
    return -(-v // m) * m


def _padded_tile_bytes(shape, itemsize):
    """Real VMEM footprint: minor dim padded to 128 lanes, 2nd-minor to 8/16/32 sublanes."""
    if len(shape) == 1:
        shape = (1,) + tuple(shape)
    sublane = 8 * max(1, 4 // itemsize)          # 8 (f32), 16 (bf16), 32 (int8)
    lead = 1
    for d in shape[:-2]:
        lead *= d
    return lead * _round_up(shape[-2], sublane) * _round_up(shape[-1], 128) * itemsize


def _vmem_limit_bytes():
    """Per-core VMEM limit derived from the detected chip, with a v7x-safe fallback."""
    cap = 64 << 20                               # v7x-safe assumption if query fails
    try:
        cap = int(getattr(pltpu.get_tpu_info(), "vmem_capacity_bytes", cap))
    except Exception:
        pass
    # Leave headroom for Mosaic-internal scratch: ~48 MiB on v7x, 96 MiB on v5e/v6e.
    return min(cap * 3 // 4, 96 << 20)


def _pick_batch_block(n, per_image_bytes, fixed_bytes, budget_bytes):
    """Largest divisor of n whose accounted (padded, double-buffered) footprint fits the
    budget, preferring >= 4 grid steps (2 TensorCores x >= 2 steps), then >= 2 steps."""
    divisors = [d for d in range(1, n + 1) if n % d == 0]
    fitting = [d for d in divisors
               if fixed_bytes + d * per_image_bytes <= budget_bytes] or [1]
    for min_steps in (4, 2):
        cands = [d for d in fitting if n // d >= min_steps]
        if cands:
            return max(cands)
    return max(fitting)   # single grid step: no pipelining (and one idle core on v7x)


def transpose_x2(x_nchw, weight, bias, gamma, beta, run_mean, run_var,
                 eps=1e-5, nb=None, compute_dtype=jnp.bfloat16, output_layout="nchw"):
    N, Cin, H, W = x_nchw.shape
    Cin_w, Cout, KH, KW = weight.shape
    assert Cin_w == Cin and (KH, KW) == (4, 4)

    # Lane-dense output only when cheap: pad Cout so 4*Cout is a 128-lane multiple (unmasked
    # stores) iff the extra HBM writeback on the dominant output term stays <= 25%.
    Cout_p = Cout
    if (4 * Cout) % 128 != 0:
        cand = _round_up(Cout, 32)
        if cand * 4 <= Cout * 5:                 # <= 25% padding waste
            Cout_p = cand
    CO4 = 4 * Cout_p

    # NHWC + 1-pixel zero ring; stream the input in bf16.
    x = jnp.transpose(x_nchw, (0, 2, 3, 1))
    xp = jnp.pad(x, ((0, 0), (1, 1), (1, 1), (0, 0))).astype(compute_dtype)

    # Phase decomposition of ConvTranspose2d(k=4, s=2, p=1): output pixel (2m+py, 2n+px) uses
    # input offsets d in {-1, 0, +1}; the kernel tap used by phase bit b at offset d is:
    #   b==0: d=0 -> k=1, d=-1 -> k=3        b==1: d=0 -> k=2, d=+1 -> k=0
    def _ktap(b, d):
        return ({0: 1, -1: 3} if b == 0 else {0: 2, 1: 0}).get(d)

    # Fused per-tap weight flattened to a single (9*Cin, 4*Cout_p) contraction matrix:
    # rows ordered (dy, dx, cin), columns (py, px, cout) -> one MXU dot in the kernel.
    w_all = jnp.zeros((3, 3, Cin, CO4), jnp.float32)
    for py in (0, 1):
        for px in (0, 1):
            p = 2 * py + px
            for dy in (-1, 0, 1):
                ky = _ktap(py, dy)
                if ky is None:
                    continue
                for dx in (-1, 0, 1):
                    kx = _ktap(px, dx)
                    if kx is None:
                        continue
                    w_all = w_all.at[dy + 1, dx + 1, :, p * Cout_p:p * Cout_p + Cout].set(
                        weight[:, :, ky, kx])
    w_flat = w_all.reshape(9 * Cin, CO4).astype(compute_dtype)

    # Fold conv bias + eval-mode BatchNorm into per-(phase, channel) f32 scale/shift.
    scale = gamma / jnp.sqrt(run_var + eps)
    shift = scale * (bias - run_mean) + beta
    if Cout_p != Cout:
        scale = jnp.pad(scale, (0, Cout_p - Cout))   # padded lanes -> relu(0) = 0, sliced off
        shift = jnp.pad(shift, (0, Cout_p - Cout))
    scale4 = jnp.tile(scale, 4).reshape(1, CO4).astype(jnp.float32)
    shift4 = jnp.tile(shift, 4).reshape(1, CO4).astype(jnp.float32)

    out_dtype = x_nchw.dtype
    out_isize = np.dtype(out_dtype).itemsize
    c_isize = np.dtype(compute_dtype).itemsize
    m_img = H * W

    # Honest per-image VMEM accounting (tile padding + pipeline double-buffering).
    in_img = (H + 2) * _padded_tile_bytes((W + 2, Cin), c_isize)   # bf16 input block
    out_img = _padded_tile_bytes((m_img, CO4), out_isize)          # output block
    slab_img = _padded_tile_bytes((m_img, 9 * Cin), c_isize)       # im2col scratch
    acc_img = _padded_tile_bytes((m_img, CO4), 4)                  # f32 matmul result
    per_img = 2 * in_img + 2 * out_img + slab_img + acc_img        # 2x: double buffering
    fixed = (_padded_tile_bytes((9 * Cin, CO4), c_isize)
             + 2 * _padded_tile_bytes((1, CO4), 4))

    vmem_limit = _vmem_limit_bytes()
    if nb is None:
        nb = _pick_batch_block(N, per_img, fixed, budget_bytes=(vmem_limit * 3) // 5)
    assert N % nb == 0
    grid = (N // nb,)
    m_blk = nb * m_img
    assert m_blk % 8 == 0 or nb == N, \
        "output row block must be a sublane multiple; pick nb so nb*H*W % 8 == 0"

    cost = pl.CostEstimate(
        # Actual MXU MACs executed by the fused single dot (zero blocks included).
        flops=2 * (N * H * W) * (9 * Cin) * CO4,
        transcendentals=0,
        bytes_accessed=(N * (H + 2) * (W + 2) * Cin * c_isize
                        + N * H * W * CO4 * out_isize
                        + 9 * Cin * CO4 * c_isize + 2 * 4 * CO4),
    )

    out = pl.pallas_call(
        _transposex2_kernel,
        out_shape=jax.ShapeDtypeStruct((N * H * W, CO4), out_dtype),
        grid_spec=pltpu.PrefetchScalarGridSpec(
            num_scalar_prefetch=0,
            grid=grid,
            in_specs=[
                pl.BlockSpec((nb, H + 2, W + 2, Cin), lambda b: (b, 0, 0, 0)),
                pl.BlockSpec((9 * Cin, CO4), lambda b: (0, 0)),
                pl.BlockSpec((1, CO4), lambda b: (0, 0)),
                pl.BlockSpec((1, CO4), lambda b: (0, 0)),
            ],
            out_specs=pl.BlockSpec((m_blk, CO4), lambda b: (b, 0)),
            scratch_shapes=[pltpu.VMEM((m_blk, 9 * Cin), compute_dtype)],
        ),
        compiler_params=pltpu.CompilerParams(
            dimension_semantics=("parallel",),
            vmem_limit_bytes=vmem_limit),
        cost_estimate=cost,
    )(xp, w_flat, scale4, shift4)

    out = out.reshape(N, H, W, 2, 2, Cout_p)             # (n, h, w, py, px, c)
    if Cout_p != Cout:
        out = out[..., :Cout]
    if output_layout == "phased":
        return out                                       # skip the NCHW HBM round-trip
    out = jnp.transpose(out, (0, 5, 1, 3, 2, 4))         # (n, c, h, py, w, px)
    return out.reshape(N, Cout, 2 * H, 2 * W)            # NCHW, 2x upsampled


def reference(x_nchw, weight, bias, gamma, beta, run_mean, run_var, eps=1e-5):
    """Pure-JAX reference: ConvTranspose2d as lhs-dilated conv with flipped kernel.

    Inputs are rounded through bf16 exactly like the kernel's streamed operands so the
    comparison isolates algorithmic error from the deliberate bf16 quantization.
    """
    xq = x_nchw.astype(jnp.bfloat16).astype(jnp.float32)
    wq = weight.astype(jnp.bfloat16).astype(jnp.float32)
    K = jnp.transpose(wq[:, :, ::-1, ::-1], (1, 0, 2, 3))   # (Cout, Cin, 4, 4)
    y = jax.lax.conv_general_dilated(
        xq, K, window_strides=(1, 1),
        padding=((2, 2), (2, 2)), lhs_dilation=(2, 2),
        dimension_numbers=('NCHW', 'OIHW', 'NCHW'),
        precision=jax.lax.Precision.HIGHEST)
    y = y + bias[None, :, None, None]
    scale = gamma / jnp.sqrt(run_var + eps)
    y = scale[None, :, None, None] * (y - run_mean[None, :, None, None]) + beta[None, :, None, None]
    return jnp.maximum(y, 0.0)


if __name__ == "__main__":
    key = jax.random.PRNGKey(0)
    k1, k2, k3, k4, k5, k6, k7 = jax.random.split(key, 7)
    N, Cin, Cout, H, W = 2, 4, 8, 16, 16

    x = jax.random.normal(k1, (N, Cin, H, W), jnp.float32)
    weight = 0.1 * jax.random.normal(k2, (Cin, Cout, 4, 4), jnp.float32)   # ConvTranspose2d weight (Cin, Cout, kH, kW)
    bias = 0.1 * jax.random.normal(k3, (Cout,), jnp.float32)
    gamma = 1.0 + 0.1 * jax.random.normal(k4, (Cout,), jnp.float32)
    beta = 0.1 * jax.random.normal(k5, (Cout,), jnp.float32)
    run_mean = 0.1 * jax.random.normal(k6, (Cout,), jnp.float32)
    run_var = jax.random.uniform(k7, (Cout,), jnp.float32, minval=0.5, maxval=1.5)

    out = jax.jit(transpose_x2)(x, weight, bias, gamma, beta, run_mean, run_var)
    out = jax.block_until_ready(out)

    ref = reference(x, weight, bias, gamma, beta, run_mean, run_var)
    assert out.shape == (N, Cout, 2 * H, 2 * W), out.shape
    if np.allclose(np.asarray(out), np.asarray(ref), atol=1e-3, rtol=1e-3):
        print("KERNEL_OK")
    else:
        print("MISMATCH max_abs_err=",
              float(np.max(np.abs(np.asarray(out) - np.asarray(ref)))))
</pallas_src>

<mosaic_0001>
module attributes {stable_mosaic.version = 11 : i64} {
  func.func @_transposex2_kernel(%arg0: i32, %arg1: memref<1x18x18x4xbf16, #tpu.memory_space<vmem>>, %arg2: memref<36x32xbf16, #tpu.memory_space<vmem>>, %arg3: memref<1x32xf32, #tpu.memory_space<vmem>>, %arg4: memref<1x32xf32, #tpu.memory_space<vmem>>, %arg5: memref<256x32xf32, #tpu.memory_space<vmem>>, %arg6: memref<256x36xbf16, #tpu.memory_space<vmem>>) attributes {dimension_semantics = [#tpu.dimension_semantics<parallel>], iteration_bounds = array<i64: 2>, scalar_prefetch = 0 : i64, scratch_operands = 1 : i64, tpu.core_type = #tpu.core_type<tc>, window_params = [{transform_indices = @transform_0, window_bounds = array<i64: 1, 18, 18, 4>}, {pipeline_mode = #tpu.pipeline_mode<synchronous>, transform_indices = @transform_1, window_bounds = array<i64: 36, 32>}, {pipeline_mode = #tpu.pipeline_mode<synchronous>, transform_indices = @transform_2, window_bounds = array<i64: 1, 32>}, {pipeline_mode = #tpu.pipeline_mode<synchronous>, transform_indices = @transform_3, window_bounds = array<i64: 1, 32>}, {transform_indices = @transform_4, window_bounds = array<i64: 256, 32>}]} {
    %c0 = arith.constant 0 : index
    %c0_0 = arith.constant 0 : index
    %c0_1 = arith.constant 0 : index
    %c0_2 = arith.constant 0 : index
    %0 = vector.load %arg1[%c0, %c0_0, %c0_1, %c0_2] : memref<1x18x18x4xbf16, #tpu.memory_space<vmem>>, vector<1x16x16x4xbf16>
    %1 = vector.shape_cast %0 : vector<1x16x16x4xbf16> to vector<256x4xbf16>
    %c0_3 = arith.constant 0 : index
    %c0_4 = arith.constant 0 : index
    %2 = vector.load %arg6[%c0_3, %c0_4] : memref<256x36xbf16, #tpu.memory_space<vmem>>, vector<256x4xbf16>
    tpu.vector_store %arg6[%c0_3, %c0_4], %1 {strides = array<i32>} : memref<256x36xbf16, #tpu.memory_space<vmem>>, vector<256x4xbf16>,
    %c0_5 = arith.constant 0 : index
    %c0_6 = arith.constant 0 : index
    %c1 = arith.constant 1 : index
    %c0_7 = arith.constant 0 : index
    %3 = vector.load %arg1[%c0_5, %c0_6, %c1, %c0_7] : memref<1x18x18x4xbf16, #tpu.memory_space<vmem>>, vector<1x16x16x4xbf16>
    %4 = vector.shape_cast %3 : vector<1x16x16x4xbf16> to vector<256x4xbf16>
    %c0_8 = arith.constant 0 : index
    %c4 = arith.constant 4 : index
    %5 = vector.load %arg6[%c0_8, %c4] : memref<256x36xbf16, #tpu.memory_space<vmem>>, vector<256x4xbf16>
    tpu.vector_store %arg6[%c0_8, %c4], %4 {strides = array<i32>} : memref<256x36xbf16, #tpu.memory_space<vmem>>, vector<256x4xbf16>,
    %c0_9 = arith.constant 0 : index
    %c0_10 = arith.constant 0 : index
    %c2 = arith.constant 2 : index
    %c0_11 = arith.constant 0 : index
    %6 = vector.load %arg1[%c0_9, %c0_10, %c2, %c0_11] : memref<1x18x18x4xbf16, #tpu.memory_space<vmem>>, vector<1x16x16x4xbf16>
    %7 = vector.shape_cast %6 : vector<1x16x16x4xbf16> to vector<256x4xbf16>
    %c0_12 = arith.constant 0 : index
    %c8 = arith.constant 8 : index
    %8 = vector.load %arg6[%c0_12, %c8] : memref<256x36xbf16, #tpu.memory_space<vmem>>, vector<256x4xbf16>
    tpu.vector_store %arg6[%c0_12, %c8], %7 {strides = array<i32>} : memref<256x36xbf16, #tpu.memory_space<vmem>>, vector<256x4xbf16>,
    %c0_13 = arith.constant 0 : index
    %c1_14 = arith.constant 1 : index
    %c0_15 = arith.constant 0 : index
    %c0_16 = arith.constant 0 : index
    %9 = vector.load %arg1[%c0_13, %c1_14, %c0_15, %c0_16] : memref<1x18x18x4xbf16, #tpu.memory_space<vmem>>, vector<1x16x16x4xbf16>
    %10 = vector.shape_cast %9 : vector<1x16x16x4xbf16> to vector<256x4xbf16>
    %c0_17 = arith.constant 0 : index
    %c12 = arith.constant 12 : index
    %11 = vector.load %arg6[%c0_17, %c12] : memref<256x36xbf16, #tpu.memory_space<vmem>>, vector<256x4xbf16>
    tpu.vector_store %arg6[%c0_17, %c12], %10 {strides = array<i32>} : memref<256x36xbf16, #tpu.memory_space<vmem>>, vector<256x4xbf16>,
    %c0_18 = arith.constant 0 : index
    %c1_19 = arith.constant 1 : index
    %c1_20 = arith.constant 1 : index
    %c0_21 = arith.constant 0 : index
    %12 = vector.load %arg1[%c0_18, %c1_19, %c1_20, %c0_21] : memref<1x18x18x4xbf16, #tpu.memory_space<vmem>>, vector<1x16x16x4xbf16>
    %13 = vector.shape_cast %12 : vector<1x16x16x4xbf16> to vector<256x4xbf16>
    %c0_22 = arith.constant 0 : index
    %c16 = arith.constant 16 : index
    %14 = vector.load %arg6[%c0_22, %c16] : memref<256x36xbf16, #tpu.memory_space<vmem>>, vector<256x4xbf16>
    tpu.vector_store %arg6[%c0_22, %c16], %13 {strides = array<i32>} : memref<256x36xbf16, #tpu.memory_space<vmem>>, vector<256x4xbf16>,
    %c0_23 = arith.constant 0 : index
    %c1_24 = arith.constant 1 : index
    %c2_25 = arith.constant 2 : index
    %c0_26 = arith.constant 0 : index
    %15 = vector.load %arg1[%c0_23, %c1_24, %c2_25, %c0_26] : memref<1x18x18x4xbf16, #tpu.memory_space<vmem>>, vector<1x16x16x4xbf16>
    %16 = vector.shape_cast %15 : vector<1x16x16x4xbf16> to vector<256x4xbf16>
    %c0_27 = arith.constant 0 : index
    %c20 = arith.constant 20 : index
    %17 = vector.load %arg6[%c0_27, %c20] : memref<256x36xbf16, #tpu.memory_space<vmem>>, vector<256x4xbf16>
    tpu.vector_store %arg6[%c0_27, %c20], %16 {strides = array<i32>} : memref<256x36xbf16, #tpu.memory_space<vmem>>, vector<256x4xbf16>,
    %c0_28 = arith.constant 0 : index
    %c2_29 = arith.constant 2 : index
    %c0_30 = arith.constant 0 : index
    %c0_31 = arith.constant 0 : index
    %18 = vector.load %arg1[%c0_28, %c2_29, %c0_30, %c0_31] : memref<1x18x18x4xbf16, #tpu.memory_space<vmem>>, vector<1x16x16x4xbf16>
    %19 = vector.shape_cast %18 : vector<1x16x16x4xbf16> to vector<256x4xbf16>
    %c0_32 = arith.constant 0 : index
    %c24 = arith.constant 24 : index
    %20 = vector.load %arg6[%c0_32, %c24] : memref<256x36xbf16, #tpu.memory_space<vmem>>, vector<256x4xbf16>
    tpu.vector_store %arg6[%c0_32, %c24], %19 {strides = array<i32>} : memref<256x36xbf16, #tpu.memory_space<vmem>>, vector<256x4xbf16>,
    %c0_33 = arith.constant 0 : index
    %c2_34 = arith.constant 2 : index
    %c1_35 = arith.constant 1 : index
    %c0_36 = arith.constant 0 : index
    %21 = vector.load %arg1[%c0_33, %c2_34, %c1_35, %c0_36] : memref<1x18x18x4xbf16, #tpu.memory_space<vmem>>, vector<1x16x16x4xbf16>
    %22 = vector.shape_cast %21 : vector<1x16x16x4xbf16> to vector<256x4xbf16>
    %c0_37 = arith.constant 0 : index
    %c28 = arith.constant 28 : index
    %23 = vector.load %arg6[%c0_37, %c28] : memref<256x36xbf16, #tpu.memory_space<vmem>>, vector<256x4xbf16>
    tpu.vector_store %arg6[%c0_37, %c28], %22 {strides = array<i32>} : memref<256x36xbf16, #tpu.memory_space<vmem>>, vector<256x4xbf16>,
    %c0_38 = arith.constant 0 : index
    %c2_39 = arith.constant 2 : index
    %c2_40 = arith.constant 2 : index
    %c0_41 = arith.constant 0 : index
    %24 = vector.load %arg1[%c0_38, %c2_39, %c2_40, %c0_41] : memref<1x18x18x4xbf16, #tpu.memory_space<vmem>>, vector<1x16x16x4xbf16>
    %25 = vector.shape_cast %24 : vector<1x16x16x4xbf16> to vector<256x4xbf16>
    %c0_42 = arith.constant 0 : index
    %c32 = arith.constant 32 : index
    %26 = vector.load %arg6[%c0_42, %c32] : memref<256x36xbf16, #tpu.memory_space<vmem>>, vector<256x4xbf16>
    tpu.vector_store %arg6[%c0_42, %c32], %25 {strides = array<i32>} : memref<256x36xbf16, #tpu.memory_space<vmem>>, vector<256x4xbf16>,
    %c0_43 = arith.constant 0 : index
    %c0_44 = arith.constant 0 : index
    %27 = vector.load %arg6[%c0_43, %c0_44] : memref<256x36xbf16, #tpu.memory_space<vmem>>, vector<256x36xbf16>
    %c0_45 = arith.constant 0 : index
    %c0_46 = arith.constant 0 : index
    %28 = vector.load %arg2[%c0_45, %c0_46] : memref<36x32xbf16, #tpu.memory_space<vmem>>, vector<36x32xbf16>
    %cst = arith.constant dense<0.000000e+00> : vector<256x32xf32>
    %29 = tpu.matmul %27, %28, %cst {dimension_numbers = #tpu.dot_dimension_numbers<[1], [0], [0], [1], [0, 0, 1, 1], [], []>} : vector<256x36xbf16>, vector<36x32xbf16>, vector<256x32xf32> -> vector<256x32xf32>
    %c0_47 = arith.constant 0 : index
    %c0_48 = arith.constant 0 : index
    %30 = vector.load %arg3[%c0_47, %c0_48] : memref<1x32xf32, #tpu.memory_space<vmem>>, vector<1x32xf32>
    %31 = vector.broadcast %30 : vector<1x32xf32> to vector<256x32xf32>
    %32 = arith.mulf %29, %31 : vector<256x32xf32>
    %c0_49 = arith.constant 0 : index
    %c0_50 = arith.constant 0 : index
    %33 = vector.load %arg4[%c0_49, %c0_50] : memref<1x32xf32, #tpu.memory_space<vmem>>, vector<1x32xf32>
    %34 = vector.broadcast %33 : vector<1x32xf32> to vector<256x32xf32>
    %35 = arith.addf %32, %34 : vector<256x32xf32>
    %cst_51 = arith.constant 0.000000e+00 : f32
    %36 = vector.broadcast %cst_51 : f32 to vector<256x32xf32>
    %37 = arith.maximumf %35, %36 : vector<256x32xf32>
    %c0_52 = arith.constant 0 : index
    %c0_53 = arith.constant 0 : index
    %38 = vector.load %arg5[%c0_52, %c0_53] : memref<256x32xf32, #tpu.memory_space<vmem>>, vector<256x32xf32>
    tpu.vector_store %arg5[%c0_52, %c0_53], %37 {strides = array<i32>} : memref<256x32xf32, #tpu.memory_space<vmem>>, vector<256x32xf32>,
    return
  }
  func.func @transform_0(%arg0: i32) -> (i32, i32, i32, i32) {
    %c0_i32 = arith.constant 0 : i32
    %c0_i32_0 = arith.constant 0 : i32
    %c0_i32_1 = arith.constant 0 : i32
    %c0_i32_2 = arith.constant 0 : i32
    return %arg0, %c0_i32, %c0_i32_0, %c0_i32_1 : i32, i32, i32, i32
  }
  func.func @transform_1(%arg0: i32) -> (i32, i32) {
    %c0_i32 = arith.constant 0 : i32
    %c0_i32_0 = arith.constant 0 : i32
    %c0_i32_1 = arith.constant 0 : i32
    return %c0_i32, %c0_i32_0 : i32, i32
  }
  func.func @transform_2(%arg0: i32) -> (i32, i32) {
    %c0_i32 = arith.constant 0 : i32
    %c0_i32_0 = arith.constant 0 : i32
    %c0_i32_1 = arith.constant 0 : i32
    return %c0_i32, %c0_i32_0 : i32, i32
  }
  func.func @transform_3(%arg0: i32) -> (i32, i32) {
    %c0_i32 = arith.constant 0 : i32
    %c0_i32_0 = arith.constant 0 : i32
    %c0_i32_1 = arith.constant 0 : i32
    return %c0_i32, %c0_i32_0 : i32, i32
  }
  func.func @transform_4(%arg0: i32) -> (i32, i32) {
    %c0_i32 = arith.constant 0 : i32
    %c0_i32_0 = arith.constant 0 : i32
    return %arg0, %c0_i32 : i32, i32
  }
}

</mosaic_0001>

<llo_original>
// kernel: tile.18
$region0: #{tile.18}
  #allocation0 [shape = 's32[1]{0}', space=sflag, size = 0x4, scoped, tag = 'scoped memory for tile.18']
  %s0 = inlined_call_operand.vmem [shape: f32[8], index: 0, kind: input, shape index: {}]
  %s1 = inlined_call_operand.vmem [shape: f32[4,8], index: 1, kind: output, shape index: {}]
  // Predicated region
  $region2: #{tile.18} parent=0 // pred_check
    _
  $region3: #{tile.18} parent=0 // pred_check_branch
    %3 = sbr.rel (0) target = $region5
  $region4: #{tile.18} parent=0 // pred_region
    _
  $region5: #{tile.18} parent=0 // pred_fallthru
    _
  %v4 = vld [vmem:[%s0] ss:$0 sm:$0xff]
  %5 = vst [vmem:[%s1] sm:$0xf] %v4

// kernel: tile.19
$region0: #{tile.19}
  %s0 = inlined_call_operand.vmem [shape: f32[4,8], index: 0, kind: input, shape index: {}]
  %s1 = inlined_call_operand.vmem [shape: f32[1,32], index: 1, kind: output, shape index: {}]
  $region1: #{tile.19} parent=0
    #allocation0 [shape = 'u8[4096]{0}', space=vmem, size = 0x1000, scoped, tag = 'scoped mem for output reshape']
    #allocation1 [shape = 'u8[4096]{0}', space=vmem, size = 0x1000, scoped, tag = 'scoped mem for input reshape']
    %s3 = sshllo.u32 0, 4
    %v4 = vld [vmem:[%s0] sm:%s3]
    %5 = vst [vmem:[#allocation1] sm:%s3] %v4
    %v6 = vld [vmem:[#allocation1] sm:$0x1]
    %vm7 = vcmask 64512
    %8 = vst.msk [vmem:[#allocation0] sm:$0x1] %vm7, %v6
    %s9 = scalar_lea.vmem [#allocation1], 3
    %v10 = vld [vmem:[%s9] sm:$0x1]
    %11 = vrot.lane.b32.xlu0 %v10, 24
    %v12 = vpop.permute.xlu0 %11
    %vm13 = vcmask 261312
    %14 = vst.msk [vmem:[#allocation0] sm:$0x1] %vm13, %v12
    %s15 = scalar_lea.vmem [#allocation1], 2
    %v16 = vld [vmem:[%s15] sm:$0x1]
    %17 = vrot.lane.b32.xlu0 %v16, 16
    %v18 = vpop.permute.xlu0 %17
    %vm19 = vcmask 195712
    %20 = vst.msk [vmem:[#allocation0] sm:$0x1] %vm19, %v18
    %s21 = scalar_lea.vmem [#allocation1], 1
    %v22 = vld [vmem:[%s21] sm:$0x1]
    %23 = vrot.lane.b32.xlu0 %v22, 8
    %v24 = vpop.permute.xlu0 %23
    %vm25 = vcmask 130112
    %26 = vst.msk [vmem:[#allocation0] sm:$0x1] %vm25, %v24
    %s28 = sshllo.u32 0, 1
    %v30 = vld [vmem:[#allocation0] sm:%s28]
    %s31 = sshllo.u32 0, 1
    %32 = vst [vmem:[%s1] sm:%s31] %v30

</llo_original>
